<compile_context>
chip_gen: v5e
topology: v5e:2x2
jax: 0.10.0
libtpu: 0.0.40
codegen_flags: <defaults>
</compile_context>

<pallas_src>
import math
from functools import partial

import jax
import jax.numpy as jnp
from jax.experimental import pallas as pl
from jax.experimental.pallas import tpu as pltpu


# ----------------------------------------------------------------------------
# Activation (static python arg; applied in f32 inside the kernel).
# ----------------------------------------------------------------------------
def _apply_act(h, act):
    if act in ("gelu_pytorch_tanh", "gelu_new"):
        # torch.nn.functional.gelu(x, approximate='tanh')  ==  NewGELUActivation
        c = 0.7978845608028654  # sqrt(2/pi)
        return 0.5 * h * (1.0 + jnp.tanh(c * (h + 0.044715 * h * h * h)))
    if act == "relu":
        return jnp.maximum(h, 0.0)
    raise ValueError(f"unsupported ff_activation: {act!r}")


def _round_up(n, m):
    return ((n + m - 1) // m) * m


def _cdiv(a, b):
    return -(-a // b)


def _vmem_budget_bytes():
    """~85% of this generation's physical VMEM (v5e/v6e: 128 MiB, v7x: 64 MiB)."""
    cap = None
    try:
        cap = getattr(pltpu.get_tpu_info(), "vmem_capacity_bytes", None)
    except Exception:
        cap = None
    if not cap:
        cap = 64 << 20  # conservative fallback, safe on every generation
    return int(cap * 0.85)


def _choose_tiles(T, D, F, dtype, vmem_budget, tm=None, tf=None):
    """Pick (tm, tf).  tf == F selects the weight-resident / direct-store path."""
    itemsize = jnp.dtype(dtype).itemsize
    sub = {4: 8, 2: 16, 1: 32}.get(itemsize, 8)  # dtype-aware sublane packing

    # --- token tile ---------------------------------------------------------
    # tm = 512 keeps weight streaming above the v7x HBM/MXU ridge (~311 FLOP/B)
    # and close to the v6e ridge; tune to 1024 on v6e for very long sequences.
    if tm is None:
        tm = 512
    tm = max(sub, _round_up(min(tm, _round_up(T, sub)), sub))
    if tm >= T:
        tm = T  # single full-extent block (always a legal block shape)
    # Make sure the "parallel" axis can feed both TensorCores on v7x.
    if _cdiv(T, tm) == 1 and T >= 256:
        tm = max(sub, _round_up(_cdiv(T, 2), sub))

    if tf is not None:
        assert F % tf == 0, "explicit tf must divide F"
        return tm, tf

    def _fits(tf_c, frac):
        est = (2 * tm * D * itemsize          # x tiles (double-buffered)
               + 2 * 2 * D * tf_c * itemsize  # wi_0^T + wi_1^T tiles
               + 2 * tf_c * D * itemsize      # wo^T tiles
               + 2 * tm * D * itemsize        # output tiles
               + tm * D * 4                   # f32 accumulator scratch
               + 3 * tm * tf_c * 4)           # h0 / h1 / gated f32 intermediates
        return est <= vmem_budget * frac

    # Weight-resident fast path: whole F in one step -> weights DMA'd once.
    if _fits(F, 0.6):
        return tm, F

    # Otherwise: largest 128-multiple divisor of F whose tiles fit the budget.
    best = None
    for cand in range(128, F, 128):
        if F % cand == 0 and _fits(cand, 1.0):
            best = cand
    if best is None:
        best = 128 if F % 128 == 0 else F
    return tm, best


# ----------------------------------------------------------------------------
# Kernels
# ----------------------------------------------------------------------------
def _ffn_kernel_direct(x_ref, w0_ref, w1_ref, wo_ref, o_ref, *, act):
    """Weight-resident path (nf == 1): no accumulator round trip."""
    x = x_ref[...]
    h0 = jnp.dot(x, w0_ref[...], preferred_element_type=jnp.float32)
    h1 = jnp.dot(x, w1_ref[...], preferred_element_type=jnp.float32)
    h = (_apply_act(h0, act) * h1).astype(wo_ref.dtype)
    o_ref[...] = jnp.dot(h, wo_ref[...],
                         preferred_element_type=jnp.float32).astype(o_ref.dtype)


def _ffn_kernel_acc(x_ref, w0_ref, w1_ref, wo_ref, o_ref, acc_ref, *, act):
    """F-tiled path: f32 output accumulator across the last ("arbitrary") axis."""
    j = pl.program_id(1)

    @pl.when(j == 0)
    def _():
        acc_ref[...] = jnp.zeros_like(acc_ref)

    x = x_ref[...]
    h0 = jnp.dot(x, w0_ref[...], preferred_element_type=jnp.float32)
    h1 = jnp.dot(x, w1_ref[...], preferred_element_type=jnp.float32)
    h = (_apply_act(h0, act) * h1).astype(wo_ref.dtype)
    acc_ref[...] += jnp.dot(h, wo_ref[...], preferred_element_type=jnp.float32)

    @pl.when(j == pl.num_programs(1) - 1)
    def _():
        o_ref[...] = acc_ref[...].astype(o_ref.dtype)


# ----------------------------------------------------------------------------
# pallas_call wrapper
# ----------------------------------------------------------------------------
@partial(jax.jit, static_argnames=("tm", "tf", "act", "vmem_limit"))
def _ffn_pallas(x2, w0_t, w1_t, wo_t, *, tm, tf, act, vmem_limit):
    T, D = x2.shape
    F = w0_t.shape[1]
    assert F % tf == 0
    nf = F // tf
    nt = _cdiv(T, tm)  # ragged last token tile handled by Pallas partial blocks

    if nf == 1:
        # Weight-resident: constant weight block index -> HBM fetch once per call.
        return pl.pallas_call(
            partial(_ffn_kernel_direct, act=act),
            out_shape=jax.ShapeDtypeStruct((T, D), x2.dtype),
            grid_spec=pltpu.PrefetchScalarGridSpec(
                num_scalar_prefetch=0,
                grid=(nt,),
                in_specs=[
                    pl.BlockSpec((tm, D), lambda i: (i, 0)),
                    pl.BlockSpec((D, F), lambda i: (0, 0)),
                    pl.BlockSpec((D, F), lambda i: (0, 0)),
                    pl.BlockSpec((F, D), lambda i: (0, 0)),
                ],
                out_specs=pl.BlockSpec((tm, D), lambda i: (i, 0)),
            ),
            compiler_params=pltpu.CompilerParams(
                dimension_semantics=("parallel",),
                vmem_limit_bytes=vmem_limit,
            ),
        )(x2, w0_t, w1_t, wo_t)

    # TODO(synk): add pipeline_mode=pl.Buffered(3) on the weight specs for
    # HBM-bound (small-tm / decode) shapes once per-chip VMEM headroom is verified.
    return pl.pallas_call(
        partial(_ffn_kernel_acc, act=act),
        out_shape=jax.ShapeDtypeStruct((T, D), x2.dtype),
        grid_spec=pltpu.PrefetchScalarGridSpec(
            num_scalar_prefetch=0,
            grid=(nt, nf),                       # F (reduction) axis last
            in_specs=[
                pl.BlockSpec((tm, D), lambda i, j: (i, 0)),   # x tile
                pl.BlockSpec((D, tf), lambda i, j: (0, j)),   # wi_0^T tile
                pl.BlockSpec((D, tf), lambda i, j: (0, j)),   # wi_1^T tile
                pl.BlockSpec((tf, D), lambda i, j: (j, 0)),   # wo^T tile
            ],
            out_specs=pl.BlockSpec((tm, D), lambda i, j: (i, 0)),
            scratch_shapes=[pltpu.VMEM((tm, D), jnp.float32)],
        ),
        compiler_params=pltpu.CompilerParams(
            dimension_semantics=("parallel", "arbitrary"),
            vmem_limit_bytes=vmem_limit,
        ),
    )(x2, w0_t, w1_t, wo_t)


# ----------------------------------------------------------------------------
# Public API
# ----------------------------------------------------------------------------
def prepare_weights(wi_0, wi_1, wo):
    """One-time layout prep from torch Linear layout ([out_features, in_features]).

    Do this at weight-load time and cache the result; don't re-transpose per step.
    """
    return wi_0.T, wi_1.T, wo.T


def t5_gated_ffn_fwd(x, w0_t, w1_t, wo_t, *, act="gelu_pytorch_tanh",
                     tm=None, tf=None):
    """x: [..., D]; w0_t/w1_t: [D, F]; wo_t: [F, D] (already transposed)."""
    D = x.shape[-1]
    F = w0_t.shape[1]
    lead = x.shape[:-1]
    T = int(math.prod(lead)) if lead else 1
    budget = _vmem_budget_bytes()
    tm_e, tf_e = _choose_tiles(T, D, F, x.dtype, budget, tm=tm, tf=tf)
    out = _ffn_pallas(x.reshape(T, D), w0_t, w1_t, wo_t,
                      tm=tm_e, tf=tf_e, act=act, vmem_limit=budget)
    return out.reshape(*lead, D)


def t5_dense_gated_act_dense(x, wi_0, wi_1, wo, *,
                             ff_activation="gelu_pytorch_tanh", tm=None, tf=None):
    """Convenience wrapper taking torch-layout weights ([out, in]).

    NOTE: in a real model cache prepare_weights() and call t5_gated_ffn_fwd.
    """
    w0_t, w1_t, wo_t = prepare_weights(wi_0, wi_1, wo)
    return t5_gated_ffn_fwd(x, w0_t, w1_t, wo_t, act=ff_activation, tm=tm, tf=tf)


def _reference(x, wi_0, wi_1, wo, act):
    h0 = _apply_act(jnp.einsum("...d,fd->...f", x, wi_0), act)
    h1 = jnp.einsum("...d,fd->...f", x, wi_1)
    return jnp.einsum("...f,df->...d", h0 * h1, wo)


if __name__ == "__main__":
    # Small, module-consistent shapes (F tiles exactly by 128 for the forced test).
    batch, seq, model_dim, ff_dim = 2, 8, 128, 256
    key = jax.random.PRNGKey(0)
    kx, k0, k1, k2 = jax.random.split(key, 4)

    x = jax.random.normal(kx, (batch, seq, model_dim), dtype=jnp.float32)
    # torch Linear layout: [out_features, in_features]
    wi_0 = jax.random.normal(k0, (ff_dim, model_dim), dtype=jnp.float32) * model_dim ** -0.5
    wi_1 = jax.random.normal(k1, (ff_dim, model_dim), dtype=jnp.float32) * model_dim ** -0.5
    wo = jax.random.normal(k2, (model_dim, ff_dim), dtype=jnp.float32) * ff_dim ** -0.5

    ref = _reference(x, wi_0, wi_1, wo, "gelu_pytorch_tanh")

    # 1) Default path: weight-resident (tf = F), direct-store kernel (no acc).
    out = jax.block_until_ready(
        t5_dense_gated_act_dense(x, wi_0, wi_1, wo, ff_activation="gelu_pytorch_tanh"))
    assert out.shape == (batch, seq, model_dim)
    assert jnp.allclose(out, ref, atol=2e-3, rtol=2e-3)

    # 2) Forced F-tiled path (tm=8, tf=128 -> grid (2, 2)): exercises the f32
    #    accumulator and the pl.when init/finalize.
    w0_t, w1_t, wo_t = prepare_weights(wi_0, wi_1, wo)   # cache this in real models
    out_tiled = jax.block_until_ready(
        t5_gated_ffn_fwd(x, w0_t, w1_t, wo_t, act="gelu_pytorch_tanh", tm=8, tf=128))
    assert jnp.allclose(out_tiled, ref, atol=2e-3, rtol=2e-3)

    # 3) Ragged token count (T = 10): exercises the pad-free partial-block path.
    x_ragged = x[:, :5, :]
    ref_ragged = _reference(x_ragged, wi_0, wi_1, wo, "gelu_pytorch_tanh")
    out_ragged = jax.block_until_ready(
        t5_dense_gated_act_dense(x_ragged, wi_0, wi_1, wo))
    assert out_ragged.shape == x_ragged.shape
    assert jnp.allclose(out_ragged, ref_ragged, atol=2e-3, rtol=2e-3)

    # 4) relu activation variant (module's `activations` table).
    ref_relu = _reference(x, wi_0, wi_1, wo, "relu")
    out_relu = jax.block_until_ready(
        t5_dense_gated_act_dense(x, wi_0, wi_1, wo, ff_activation="relu"))
    assert jnp.allclose(out_relu, ref_relu, atol=2e-3, rtol=2e-3)

    # 5) bf16 smoke run: native-dtype MXU operands, f32 accumulation.
    out_bf = jax.block_until_ready(
        t5_gated_ffn_fwd(x.astype(jnp.bfloat16),
                         w0_t.astype(jnp.bfloat16),
                         w1_t.astype(jnp.bfloat16),
                         wo_t.astype(jnp.bfloat16)))
    assert out_bf.shape == (batch, seq, model_dim)
    assert bool(jnp.all(jnp.isfinite(out_bf.astype(jnp.float32))))

    print("KERNEL_OK")
</pallas_src>

<mosaic_0001>
module attributes {stable_mosaic.version = 11 : i64} {
  func.func @_ffn_kernel_direct(%arg0: i32, %arg1: memref<16x128xf32, #tpu.memory_space<vmem>>, %arg2: memref<128x256xf32, #tpu.memory_space<vmem>>, %arg3: memref<128x256xf32, #tpu.memory_space<vmem>>, %arg4: memref<256x128xf32, #tpu.memory_space<vmem>>, %arg5: memref<16x128xf32, #tpu.memory_space<vmem>>) attributes {dimension_semantics = [#tpu.dimension_semantics<parallel>], iteration_bounds = array<i64: 1>, scalar_prefetch = 0 : i64, scratch_operands = 0 : i64, tpu.core_type = #tpu.core_type<tc>, window_params = [{transform_indices = @transform_0, window_bounds = array<i64: 16, 128>}, {pipeline_mode = #tpu.pipeline_mode<synchronous>, transform_indices = @transform_1, window_bounds = array<i64: 128, 256>}, {pipeline_mode = #tpu.pipeline_mode<synchronous>, transform_indices = @transform_2, window_bounds = array<i64: 128, 256>}, {pipeline_mode = #tpu.pipeline_mode<synchronous>, transform_indices = @transform_3, window_bounds = array<i64: 256, 128>}, {transform_indices = @transform_4, window_bounds = array<i64: 16, 128>}]} {
    %c0 = arith.constant 0 : index
    %c0_0 = arith.constant 0 : index
    %0 = vector.load %arg1[%c0, %c0_0] : memref<16x128xf32, #tpu.memory_space<vmem>>, vector<16x128xf32>
    %c0_1 = arith.constant 0 : index
    %c0_2 = arith.constant 0 : index
    %1 = vector.load %arg2[%c0_1, %c0_2] : memref<128x256xf32, #tpu.memory_space<vmem>>, vector<128x256xf32>
    %cst = arith.constant dense<0.000000e+00> : vector<16x256xf32>
    %2 = tpu.matmul %0, %1, %cst {dimension_numbers = #tpu.dot_dimension_numbers<[1], [0], [0], [1], [0, 0, 1, 1], [], []>} : vector<16x128xf32>, vector<128x256xf32>, vector<16x256xf32> -> vector<16x256xf32>
    %c0_3 = arith.constant 0 : index
    %c0_4 = arith.constant 0 : index
    %3 = vector.load %arg3[%c0_3, %c0_4] : memref<128x256xf32, #tpu.memory_space<vmem>>, vector<128x256xf32>
    %cst_5 = arith.constant dense<0.000000e+00> : vector<16x256xf32>
    %4 = tpu.matmul %0, %3, %cst_5 {dimension_numbers = #tpu.dot_dimension_numbers<[1], [0], [0], [1], [0, 0, 1, 1], [], []>} : vector<16x128xf32>, vector<128x256xf32>, vector<16x256xf32> -> vector<16x256xf32>
    %cst_6 = arith.constant 5.000000e-01 : f32
    %5 = vector.broadcast %cst_6 : f32 to vector<16x256xf32>
    %6 = arith.mulf %5, %2 : vector<16x256xf32>
    %cst_7 = arith.constant 4.471500e-02 : f32
    %7 = vector.broadcast %cst_7 : f32 to vector<16x256xf32>
    %8 = arith.mulf %7, %2 : vector<16x256xf32>
    %9 = arith.mulf %8, %2 : vector<16x256xf32>
    %10 = arith.mulf %9, %2 : vector<16x256xf32>
    %11 = arith.addf %2, %10 : vector<16x256xf32>
    %cst_8 = arith.constant 0.797884583 : f32
    %12 = vector.broadcast %cst_8 : f32 to vector<16x256xf32>
    %13 = arith.mulf %12, %11 : vector<16x256xf32>
    %14 = math.tanh %13 : vector<16x256xf32>
    %cst_9 = arith.constant 1.000000e+00 : f32
    %15 = vector.broadcast %cst_9 : f32 to vector<16x256xf32>
    %16 = arith.addf %15, %14 : vector<16x256xf32>
    %17 = arith.mulf %6, %16 : vector<16x256xf32>
    %18 = arith.mulf %17, %4 : vector<16x256xf32>
    %c0_10 = arith.constant 0 : index
    %c0_11 = arith.constant 0 : index
    %19 = vector.load %arg4[%c0_10, %c0_11] : memref<256x128xf32, #tpu.memory_space<vmem>>, vector<256x128xf32>
    %cst_12 = arith.constant dense<0.000000e+00> : vector<16x128xf32>
    %20 = tpu.matmul %18, %19, %cst_12 {dimension_numbers = #tpu.dot_dimension_numbers<[1], [0], [0], [1], [0, 0, 1, 1], [], []>} : vector<16x256xf32>, vector<256x128xf32>, vector<16x128xf32> -> vector<16x128xf32>
    %c0_13 = arith.constant 0 : index
    %c0_14 = arith.constant 0 : index
    %21 = vector.load %arg5[%c0_13, %c0_14] : memref<16x128xf32, #tpu.memory_space<vmem>>, vector<16x128xf32>
    tpu.vector_store %arg5[%c0_13, %c0_14], %20 {strides = array<i32>} : memref<16x128xf32, #tpu.memory_space<vmem>>, vector<16x128xf32>,
    return
  }
  func.func @transform_0(%arg0: i32) -> (i32, i32) {
    %c0_i32 = arith.constant 0 : i32
    %c0_i32_0 = arith.constant 0 : i32
    return %arg0, %c0_i32 : i32, i32
  }
  func.func @transform_1(%arg0: i32) -> (i32, i32) {
    %c0_i32 = arith.constant 0 : i32
    %c0_i32_0 = arith.constant 0 : i32
    %c0_i32_1 = arith.constant 0 : i32
    return %c0_i32, %c0_i32_0 : i32, i32
  }
  func.func @transform_2(%arg0: i32) -> (i32, i32) {
    %c0_i32 = arith.constant 0 : i32
    %c0_i32_0 = arith.constant 0 : i32
    %c0_i32_1 = arith.constant 0 : i32
    return %c0_i32, %c0_i32_0 : i32, i32
  }
  func.func @transform_3(%arg0: i32) -> (i32, i32) {
    %c0_i32 = arith.constant 0 : i32
    %c0_i32_0 = arith.constant 0 : i32
    %c0_i32_1 = arith.constant 0 : i32
    return %c0_i32, %c0_i32_0 : i32, i32
  }
  func.func @transform_4(%arg0: i32) -> (i32, i32) {
    %c0_i32 = arith.constant 0 : i32
    %c0_i32_0 = arith.constant 0 : i32
    return %arg0, %c0_i32 : i32, i32
  }
}

</mosaic_0001>

<llo_original>
// kernel: _ffn_pallas.1
$region0: #{_ffn_pallas.1}
  #allocation0 [shape = 'u32[]', space=smem, size = 0x4, offset = 0x4, fixed_abs, tag = 'smem constant byte address 0x4 - core index']
  #allocation1 [shape = 'u32[72,128]{1,0:T(1,128)}', space=vmem, size = 0x9000, scoped, tag = 'internal scratch']
  %s0 = inlined_call_operand.hbm [shape: f32[16,128], index: 0, kind: input, shape index: {}]
  %s1 = inlined_call_operand.hbm [shape: f32[128,256], index: 1, kind: input, shape index: {}]
  %s2 = inlined_call_operand.hbm [shape: f32[128,256], index: 2, kind: input, shape index: {}]
  %s3 = inlined_call_operand.hbm [shape: f32[256,128], index: 3, kind: input, shape index: {}]
  %s4 = inlined_call_operand.hbm [shape: f32[16,128], index: 4, kind: output, shape index: {}]
  %s5 = sld [smem:[#allocation0]]
  $region42: #{_ffn_pallas.1} parent=0
    _
  %s7 = ssub.s32 1, %s5
  %s8 = scalar_select 0, %s7, %s5
  $region1: #{_ffn_pallas.1} parent=0
    #allocation2 [shape = 'u8[8192]{0}', space=vmem, size = 0x2000, scoped, tag = 'input window, operand 0, single buffered']
    #allocation3 [shape = 's32[1]{0}', space=sflag, size = 0x4, scoped, tag = 'scoped memory for _ffn_pallas.1']
    #allocation4 [shape = 's32[1]{0}', space=sflag, size = 0x4, scoped, tag = 'scoped memory for _ffn_pallas.1']
    #allocation5 [shape = 'u8[131072]{0}', space=vmem, size = 0x20000, scoped, tag = 'input window, operand 1, single buffered']
    #allocation6 [shape = 's32[1]{0}', space=sflag, size = 0x4, scoped, tag = 'scoped memory for _ffn_pallas.1']
    #allocation7 [shape = 'u8[131072]{0}', space=vmem, size = 0x20000, scoped, tag = 'input window, operand 2, single buffered']
    #allocation8 [shape = 'u8[131072]{0}', space=vmem, size = 0x20000, scoped, tag = 'input window, operand 3, single buffered']
    #allocation9 [shape = 's32[1]{0}', space=sflag, size = 0x4, scoped, tag = 'scoped memory for _ffn_pallas.1']
    #allocation10 [shape = 'u8[8192]{0}', space=vmem, size = 0x2000, scoped, tag = 'output window, operand 0, single buffered']
    %9 = vsyncpa [#allocation3], 0
    %10 = vsyncpa [#allocation6], 0
    %11 = vsyncpa [#allocation9], 0
    %12 = vsyncpa [#allocation4], 0
    // Predicated region
    $region2: #{_ffn_pallas.1} parent=1 // pred_check
      _
    $region3: #{_ffn_pallas.1} parent=1 // pred_check_branch
      %14 = sbr.rel (0) target = $region5
    $region4: #{_ffn_pallas.1} parent=1 // pred_region
      %16 = vsyncadd [#allocation3], 0
      %s17 = sshll.u32 %s0, 4
      %s18 = int_to_ptr.hbm [resolvable:$true] %s17
      %s19 = sshll.u32 [#allocation2], 4
      %s20 = int_to_ptr.vmem [resolvable:$true] %s19
      %25 = dma.hbm_to_vmem [thread:$0]  %s18, 256, %s20, [#allocation3], 128, 128, 8
    $region5: #{_ffn_pallas.1} parent=1 // pred_fallthru
      _
    // Predicated region
    $region6: #{_ffn_pallas.1} parent=1 // pred_check
      _
    $region7: #{_ffn_pallas.1} parent=1 // pred_check_branch
      %27 = sbr.rel (0) target = $region9
    $region8: #{_ffn_pallas.1} parent=1 // pred_region
      %29 = vsyncadd [#allocation6], 0
      %s30 = sshll.u32 %s1, 4
      %s31 = int_to_ptr.hbm [resolvable:$true] %s30
      %s32 = sshll.u32 [#allocation5], 4
      %s33 = int_to_ptr.vmem [resolvable:$true] %s32
      %38 = dma.hbm_to_vmem [thread:$0]  %s31, 4096, %s33, [#allocation6], 256, 256, 16
    $region9: #{_ffn_pallas.1} parent=1 // pred_fallthru
      _
    // Predicated region
    $region10: #{_ffn_pallas.1} parent=1 // pred_check
      _
    $region11: #{_ffn_pallas.1} parent=1 // pred_check_branch
      %40 = sbr.rel (0) target = $region13
    $region12: #{_ffn_pallas.1} parent=1 // pred_region
      %42 = vsyncadd [#allocation6], 0
      %s43 = sshll.u32 %s2, 4
      %s44 = int_to_ptr.hbm [resolvable:$true] %s43
      %s45 = sshll.u32 [#allocation7], 4
      %s46 = int_to_ptr.vmem [resolvable:$true] %s45
      %51 = dma.hbm_to_vmem [thread:$0]  %s44, 4096, %s46, [#allocation6], 256, 256, 16
    $region13: #{_ffn_pallas.1} parent=1 // pred_fallthru
      _
    // Predicated region
    $region14: #{_ffn_pallas.1} parent=1 // pred_check
      _
    $region15: #{_ffn_pallas.1} parent=1 // pred_check_branch
      %53 = sbr.rel (0) target = $region17
    $region16: #{_ffn_pallas.1} parent=1 // pred_region
      %55 = vsyncadd [#allocation9], 0
      %s56 = sshll.u32 %s3, 4
      %s57 = int_to_ptr.hbm [resolvable:$true] %s56
      %s58 = sshll.u32 [#allocation8], 4
      %s59 = int_to_ptr.vmem [resolvable:$true] %s58
      %64 = dma.hbm_to_vmem [thread:$0]  %s57, 4096, %s59, [#allocation9], 128, 128, 8
    $region17: #{_ffn_pallas.1} parent=1 // pred_fallthru
      _
    // Predicated region
    $region18: #{_ffn_pallas.1} parent=1 // pred_check
      _
    $region19: #{_ffn_pallas.1} parent=1 // pred_check_branch
      %66 = sbr.rel (0) target = $region21
    $region20: #{_ffn_pallas.1} parent=1 // pred_region
      %68 = dma.done [#allocation3], 256
    $region21: #{_ffn_pallas.1} parent=1 // pred_fallthru
      _
    // Predicated region
    $region22: #{_ffn_pallas.1} parent=1 // pred_check
      _
    $region23: #{_ffn_pallas.1} parent=1 // pred_check_branch
      %70 = sbr.rel (0) target = $region25
    $region24: #{_ffn_pallas.1} parent=1 // pred_region
      %72 = dma.done [#allocation6], 4096
    $region25: #{_ffn_pallas.1} parent=1 // pred_fallthru
      _
    // Predicated region
    $region26: #{_ffn_pallas.1} parent=1 // pred_check
      _
    $region27: #{_ffn_pallas.1} parent=1 // pred_check_branch
      %74 = sbr.rel (0) target = $region29
    $region28: #{_ffn_pallas.1} parent=1 // pred_region
      %76 = dma.done [#allocation6], 4096
    $region29: #{_ffn_pallas.1} parent=1 // pred_fallthru
      _
    // Predicated region
    $region30: #{_ffn_pallas.1} parent=1 // pred_check
      _
    $region31: #{_ffn_pallas.1} parent=1 // pred_check_branch
      %78 = sbr.rel (0) target = $region33
    $region32: #{_ffn_pallas.1} parent=1 // pred_region
      %80 = dma.done [#allocation9], 4096
    $region33: #{_ffn_pallas.1} parent=1 // pred_fallthru
      _
    %v81 = vld [vmem:[#allocation2] sm:$0xff]
    %v82 = vld [vmem:[#allocation2 + $0x8] sm:$0xff]
    %v83 = vld [vmem:[#allocation5] sm:$0xff]
    %v84 = vld [vmem:[#allocation5 + $0x8] sm:$0xff]
    %v85 = vld [vmem:[#allocation5 + $0x10] sm:$0xff]
    %v86 = vld [vmem:[#allocation5 + $0x18] sm:$0xff]
    %v87 = vld [vmem:[#allocation5 + $0x20] sm:$0xff]
    %v88 = vld [vmem:[#allocation5 + $0x28] sm:$0xff]
    %v89 = vld [vmem:[#allocation5 + $0x30] sm:$0xff]
    %v90 = vld [vmem:[#allocation5 + $0x38] sm:$0xff]
    %v91 = vld [vmem:[#allocation5 + $0x40] sm:$0xff]
    %v92 = vld [vmem:[#allocation5 + $0x48] sm:$0xff]
    %v93 = vld [vmem:[#allocation5 + $0x50] sm:$0xff]
    %v94 = vld [vmem:[#allocation5 + $0x58] sm:$0xff]
    %v95 = vld [vmem:[#allocation5 + $0x60] sm:$0xff]
    %v96 = vld [vmem:[#allocation5 + $0x68] sm:$0xff]
    %v97 = vld [vmem:[#allocation5 + $0x70] sm:$0xff]
    %v98 = vld [vmem:[#allocation5 + $0x78] sm:$0xff]
    %v99 = vld [vmem:[#allocation5 + $0x80] sm:$0xff]
    %v100 = vld [vmem:[#allocation5 + $0x88] sm:$0xff]
    %v101 = vld [vmem:[#allocation5 + $0x90] sm:$0xff]
    %v102 = vld [vmem:[#allocation5 + $0x98] sm:$0xff]
    %v103 = vld [vmem:[#allocation5 + $0xa0] sm:$0xff]
    %v104 = vld [vmem:[#allocation5 + $0xa8] sm:$0xff]
    %v105 = vld [vmem:[#allocation5 + $0xb0] sm:$0xff]
    %v106 = vld [vmem:[#allocation5 + $0xb8] sm:$0xff]
    %v107 = vld [vmem:[#allocation5 + $0xc0] sm:$0xff]
    %v108 = vld [vmem:[#allocation5 + $0xc8] sm:$0xff]
    %v109 = vld [vmem:[#allocation5 + $0xd0] sm:$0xff]
    %v110 = vld [vmem:[#allocation5 + $0xd8] sm:$0xff]
    %v111 = vld [vmem:[#allocation5 + $0xe0] sm:$0xff]
    %v112 = vld [vmem:[#allocation5 + $0xe8] sm:$0xff]
    %v113 = vld [vmem:[#allocation5 + $0xf0] sm:$0xff]
    %v114 = vld [vmem:[#allocation5 + $0xf8] sm:$0xff]
    %115 = vmatpush.msra.mxu0 %v113
    %116 = vmatpush.msra.mxu0 %v111
    %117 = vmatpush.msra.mxu0 %v109
    %118 = vmatpush.msra.mxu0 %v107
    %119 = vmatpush.msra.mxu0 %v105
    %120 = vmatpush.msra.mxu0 %v103
    %121 = vmatpush.msra.mxu0 %v101
    %122 = vmatpush.msra.mxu0 %v99
    %123 = vmatpush.msra.mxu0 %v97
    %124 = vmatpush.msra.mxu0 %v95
    %125 = vmatpush.msra.mxu0 %v93
    %126 = vmatpush.msra.mxu0 %v91
    %127 = vmatpush.msra.mxu0 %v89
    %128 = vmatpush.msra.mxu0 %v87
    %129 = vmatpush.msra.mxu0 %v85
    %130 = vmatpush.msra.mxu0 %v83
    %131 = vmatmul.f32.gmra.mxu0 %v81
    %v132 = vpop.f32.mrf.mxu0
    %v133 = vadd.f32 0.0, %v132
    %134 = vmatmul.f32.gmra.mxu0 %v82
    %v135 = vpop.f32.mrf.mxu0
    %v136 = vadd.f32 0.0, %v135
    %137 = vdwg.mxu0
    %138 = vmatpush.msra.mxu0 %v114
    %139 = vmatpush.msra.mxu0 %v112
    %140 = vmatpush.msra.mxu0 %v110
    %141 = vmatpush.msra.mxu0 %v108
    %142 = vmatpush.msra.mxu0 %v106
    %143 = vmatpush.msra.mxu0 %v104
    %144 = vmatpush.msra.mxu0 %v102
    %145 = vmatpush.msra.mxu0 %v100
    %146 = vmatpush.msra.mxu0 %v98
    %147 = vmatpush.msra.mxu0 %v96
    %148 = vmatpush.msra.mxu0 %v94
    %149 = vmatpush.msra.mxu0 %v92
    %150 = vmatpush.msra.mxu0 %v90
    %151 = vmatpush.msra.mxu0 %v88
    %152 = vmatpush.msra.mxu0 %v86
    %153 = vmatpush.msra.mxu0 %v84
    %154 = vmatmul.f32.gmra.mxu0 %v81
    %v155 = vpop.f32.mrf.mxu0
    %v156 = vadd.f32 0.0, %v155
    %157 = vmatmul.f32.gmra.mxu0 %v82
    %v158 = vpop.f32.mrf.mxu0
    %v159 = vadd.f32 0.0, %v158
    %160 = vdwg.mxu0
    %v161 = vld [vmem:[#allocation7] sm:$0xff]
    %v162 = vld [vmem:[#allocation7 + $0x8] sm:$0xff]
    %v163 = vld [vmem:[#allocation7 + $0x10] sm:$0xff]
    %v164 = vld [vmem:[#allocation7 + $0x18] sm:$0xff]
    %v165 = vld [vmem:[#allocation7 + $0x20] sm:$0xff]
    %v166 = vld [vmem:[#allocation7 + $0x28] sm:$0xff]
    %v167 = vld [vmem:[#allocation7 + $0x30] sm:$0xff]
    %v168 = vld [vmem:[#allocation7 + $0x38] sm:$0xff]
    %v169 = vld [vmem:[#allocation7 + $0x40] sm:$0xff]
    %v170 = vld [vmem:[#allocation7 + $0x48] sm:$0xff]
    %v171 = vld [vmem:[#allocation7 + $0x50] sm:$0xff]
    %v172 = vld [vmem:[#allocation7 + $0x58] sm:$0xff]
    %v173 = vld [vmem:[#allocation7 + $0x60] sm:$0xff]
    %v174 = vld [vmem:[#allocation7 + $0x68] sm:$0xff]
    %v175 = vld [vmem:[#allocation7 + $0x70] sm:$0xff]
    %v176 = vld [vmem:[#allocation7 + $0x78] sm:$0xff]
    %v177 = vld [vmem:[#allocation7 + $0x80] sm:$0xff]
    %v178 = vld [vmem:[#allocation7 + $0x88] sm:$0xff]
    %v179 = vld [vmem:[#allocation7 + $0x90] sm:$0xff]
    %v180 = vld [vmem:[#allocation7 + $0x98] sm:$0xff]
    %v181 = vld [vmem:[#allocation7 + $0xa0] sm:$0xff]
    %v182 = vld [vmem:[#allocation7 + $0xa8] sm:$0xff]
    %v183 = vld [vmem:[#allocation7 + $0xb0] sm:$0xff]
    %v184 = vld [vmem:[#allocation7 + $0xb8] sm:$0xff]
    %v185 = vld [vmem:[#allocation7 + $0xc0] sm:$0xff]
    %v186 = vld [vmem:[#allocation7 + $0xc8] sm:$0xff]
    %v187 = vld [vmem:[#allocation7 + $0xd0] sm:$0xff]
    %v188 = vld [vmem:[#allocation7 + $0xd8] sm:$0xff]
    %v189 = vld [vmem:[#allocation7 + $0xe0] sm:$0xff]
    %v190 = vld [vmem:[#allocation7 + $0xe8] sm:$0xff]
    %v191 = vld [vmem:[#allocation7 + $0xf0] sm:$0xff]
    %v192 = vld [vmem:[#allocation7 + $0xf8] sm:$0xff]
    %193 = vmatpush.msra.mxu0 %v191
    %194 = vmatpush.msra.mxu0 %v189
    %195 = vmatpush.msra.mxu0 %v187
    %196 = vmatpush.msra.mxu0 %v185
    %197 = vmatpush.msra.mxu0 %v183
    %198 = vmatpush.msra.mxu0 %v181
    %199 = vmatpush.msra.mxu0 %v179
    %200 = vmatpush.msra.mxu0 %v177
    %201 = vmatpush.msra.mxu0 %v175
    %202 = vmatpush.msra.mxu0 %v173
    %203 = vmatpush.msra.mxu0 %v171
    %204 = vmatpush.msra.mxu0 %v169
    %205 = vmatpush.msra.mxu0 %v167
    %206 = vmatpush.msra.mxu0 %v165
    %207 = vmatpush.msra.mxu0 %v163
    %208 = vmatpush.msra.mxu0 %v161
    %209 = vmatmul.f32.gmra.mxu0 %v81
    %v210 = vpop.f32.mrf.mxu0
    %v211 = vadd.f32 0.0, %v210
    %212 = vmatmul.f32.gmra.mxu0 %v82
    %v213 = vpop.f32.mrf.mxu0
    %v214 = vadd.f32 0.0, %v213
    %215 = vdwg.mxu0
    %216 = vmatpush.msra.mxu0 %v192
    %217 = vmatpush.msra.mxu0 %v190
    %218 = vmatpush.msra.mxu0 %v188
    %219 = vmatpush.msra.mxu0 %v186
    %220 = vmatpush.msra.mxu0 %v184
    %221 = vmatpush.msra.mxu0 %v182
    %222 = vmatpush.msra.mxu0 %v180
    %223 = vmatpush.msra.mxu0 %v178
    %224 = vmatpush.msra.mxu0 %v176
    %225 = vmatpush.msra.mxu0 %v174
    %226 = vmatpush.msra.mxu0 %v172
    %227 = vmatpush.msra.mxu0 %v170
    %228 = vmatpush.msra.mxu0 %v168
    %229 = vmatpush.msra.mxu0 %v166
    %230 = vmatpush.msra.mxu0 %v164
    %231 = vmatpush.msra.mxu0 %v162
    %232 = vmatmul.f32.gmra.mxu0 %v81
    %v233 = vpop.f32.mrf.mxu0
    %v234 = vadd.f32 0.0, %v233
    %235 = vmatmul.f32.gmra.mxu0 %v82
    %v236 = vpop.f32.mrf.mxu0
    %v237 = vadd.f32 0.0, %v236
    %238 = vdwg.mxu0
    %v239 = vmul.f32 %v133, 0.5
    %v240 = vmul.f32 %v156, 0.5
    %v241 = vmul.f32 %v136, 0.5
    %v242 = vmul.f32 %v159, 0.5
    %v243 = vmul.f32 %v133, 0.044715
    %v244 = vmul.f32 %v156, 0.044715
    %v245 = vmul.f32 %v136, 0.044715
    %v246 = vmul.f32 %v159, 0.044715
    %v247 = vmul.f32 %v243, %v133
    %v248 = vmul.f32 %v244, %v156
    %v249 = vmul.f32 %v245, %v136
    %v250 = vmul.f32 %v246, %v159
    %v251 = vmul.f32 %v247, %v133
    %v252 = vmul.f32 %v248, %v156
    %v253 = vmul.f32 %v249, %v136
    %v254 = vmul.f32 %v250, %v159
    %v255 = vadd.f32 %v133, %v251
    %v256 = vadd.f32 %v156, %v252
    %v257 = vadd.f32 %v136, %v253
    %v258 = vadd.f32 %v159, %v254
    %v259 = vmul.f32 %v255, 0.7978846
    %v260 = vmul.f32 %v256, 0.7978846
    %v261 = vmul.f32 %v257, 0.7978846
    %v262 = vmul.f32 %v258, 0.7978846
    %v263 = vtanh.pop %v259
    %v264 = vtanh.pop %v260
    %v265 = vtanh.pop %v261
    %v266 = vtanh.pop %v262
    %v267 = vadd.f32 %v263, 1.0
    %v268 = vadd.f32 %v264, 1.0
    %v269 = vadd.f32 %v265, 1.0
    %v270 = vadd.f32 %v266, 1.0
    %v271 = vmul.f32 %v239, %v267
    %v272 = vmul.f32 %v240, %v268
    %v273 = vmul.f32 %v241, %v269
    %v274 = vmul.f32 %v242, %v270
    %v275 = vmul.f32 %v271, %v211
    %v276 = vmul.f32 %v272, %v234
    %v277 = vmul.f32 %v273, %v214
    %v278 = vmul.f32 %v274, %v237
    %v279 = vld [vmem:[#allocation8] sm:$0xff]
    %v280 = vld [vmem:[#allocation8 + $0x8] sm:$0xff]
    %v281 = vld [vmem:[#allocation8 + $0x10] sm:$0xff]
    %v282 = vld [vmem:[#allocation8 + $0x18] sm:$0xff]
    %v283 = vld [vmem:[#allocation8 + $0x20] sm:$0xff]
    %v284 = vld [vmem:[#allocation8 + $0x28] sm:$0xff]
    %v285 = vld [vmem:[#allocation8 + $0x30] sm:$0xff]
    %v286 = vld [vmem:[#allocation8 + $0x38] sm:$0xff]
    %v287 = vld [vmem:[#allocation8 + $0x40] sm:$0xff]
    %v288 = vld [vmem:[#allocation8 + $0x48] sm:$0xff]
    %v289 = vld [vmem:[#allocation8 + $0x50] sm:$0xff]
    %v290 = vld [vmem:[#allocation8 + $0x58] sm:$0xff]
    %v291 = vld [vmem:[#allocation8 + $0x60] sm:$0xff]
    %v292 = vld [vmem:[#allocation8 + $0x68] sm:$0xff]
    %v293 = vld [vmem:[#allocation8 + $0x70] sm:$0xff]
    %v294 = vld [vmem:[#allocation8 + $0x78] sm:$0xff]
    %v295 = vld [vmem:[#allocation8 + $0x80] sm:$0xff]
    %v296 = vld [vmem:[#allocation8 + $0x88] sm:$0xff]
    %v297 = vld [vmem:[#allocation8 + $0x90] sm:$0xff]
    %v298 = vld [vmem:[#allocation8 + $0x98] sm:$0xff]
    %v299 = vld [vmem:[#allocation8 + $0xa0] sm:$0xff]
    %v300 = vld [vmem:[#allocation8 + $0xa8] sm:$0xff]
    %v301 = vld [vmem:[#allocation8 + $0xb0] sm:$0xff]
    %v302 = vld [vmem:[#allocation8 + $0xb8] sm:$0xff]
    %v303 = vld [vmem:[#allocation8 + $0xc0] sm:$0xff]
    %v304 = vld [vmem:[#allocation8 + $0xc8] sm:$0xff]
    %v305 = vld [vmem:[#allocation8 + $0xd0] sm:$0xff]
    %v306 = vld [vmem:[#allocation8 + $0xd8] sm:$0xff]
    %v307 = vld [vmem:[#allocation8 + $0xe0] sm:$0xff]
    %v308 = vld [vmem:[#allocation8 + $0xe8] sm:$0xff]
    %v309 = vld [vmem:[#allocation8 + $0xf0] sm:$0xff]
    %v310 = vld [vmem:[#allocation8 + $0xf8] sm:$0xff]
    %311 = vmatpush.msra.mxu0 %v294
    %312 = vmatpush.msra.mxu0 %v293
    %313 = vmatpush.msra.mxu0 %v292
    %314 = vmatpush.msra.mxu0 %v291
    %315 = vmatpush.msra.mxu0 %v290
    %316 = vmatpush.msra.mxu0 %v289
    %317 = vmatpush.msra.mxu0 %v288
    %318 = vmatpush.msra.mxu0 %v287
    %319 = vmatpush.msra.mxu0 %v286
    %320 = vmatpush.msra.mxu0 %v285
    %321 = vmatpush.msra.mxu0 %v284
    %322 = vmatpush.msra.mxu0 %v283
    %323 = vmatpush.msra.mxu0 %v282
    %324 = vmatpush.msra.mxu0 %v281
    %325 = vmatpush.msra.mxu0 %v280
    %326 = vmatpush.msra.mxu0 %v279
    %327 = vmatmul.f32.gmra.mxu0 %v275
    %v328 = vpop.f32.mrf.mxu0
    %v329 = vadd.f32 0.0, %v328
    %330 = vmatmul.f32.gmra.mxu0 %v277
    %v331 = vpop.f32.mrf.mxu0
    %v332 = vadd.f32 0.0, %v331
    %333 = vdwg.mxu0
    %334 = vmatpush.msra.mxu0 %v310
    %335 = vmatpush.msra.mxu0 %v309
    %336 = vmatpush.msra.mxu0 %v308
    %337 = vmatpush.msra.mxu0 %v307
    %338 = vmatpush.msra.mxu0 %v306
    %339 = vmatpush.msra.mxu0 %v305
    %340 = vmatpush.msra.mxu0 %v304
    %341 = vmatpush.msra.mxu0 %v303
    %342 = vmatpush.msra.mxu0 %v302
    %343 = vmatpush.msra.mxu0 %v301
    %344 = vmatpush.msra.mxu0 %v300
    %345 = vmatpush.msra.mxu0 %v299
    %346 = vmatpush.msra.mxu0 %v298
    %347 = vmatpush.msra.mxu0 %v297
    %348 = vmatpush.msra.mxu0 %v296
    %349 = vmatpush.msra.mxu0 %v295
    %350 = vmatmul.f32.gmra.mxu0 %v276
    %v351 = vpop.f32.mrf.mxu0
    %v352 = vadd.f32 %v329, %v351
    %353 = vmatmul.f32.gmra.mxu0 %v278
    %v354 = vpop.f32.mrf.mxu0
    %v355 = vadd.f32 %v332, %v354
    %356 = vdwg.mxu0
    %357 = vst [vmem:[#allocation10] sm:$0xff] %v352
    %358 = vst [vmem:[#allocation10 + $0x8] sm:$0xff] %v355
    // Predicated region
    $region34: #{_ffn_pallas.1} parent=1 // pred_check
      _
    $region35: #{_ffn_pallas.1} parent=1 // pred_check_branch
      %360 = sbr.rel (0) target = $region37
    $region36: #{_ffn_pallas.1} parent=1 // pred_region
      %362 = vsyncadd [#allocation4], 0
      %s363 = sshll.u32 [#allocation10], 4
      %s364 = int_to_ptr.vmem [resolvable:$true] %s363
      %s365 = sshll.u32 %s4, 4
      %s366 = int_to_ptr.hbm [resolvable:$true] %s365
      %371 = dma.vmem_to_hbm [thread:$0]  %s364, 256, %s366, [#allocation4], 128, 128, 8
    $region37: #{_ffn_pallas.1} parent=1 // pred_fallthru
      _
    // Predicated region
    $region38: #{_ffn_pallas.1} parent=1 // pred_check
      _
    $region39: #{_ffn_pallas.1} parent=1 // pred_check_branch
      %373 = sbr.rel (0) target = $region41
    $region40: #{_ffn_pallas.1} parent=1 // pred_region
      %375 = dma.done [#allocation4], 256
    $region41: #{_ffn_pallas.1} parent=1 // pred_fallthru
      _
    %376 = vsyncpa [#allocation3], 1
    %377 = vsyncpa [#allocation6], 1
    %378 = vsyncpa [#allocation9], 1
    %379 = vsyncpa [#allocation4], 1

</llo_original>
